<compile_context>
chip_gen: v5e
topology: v5e:2x2
jax: 0.10.0
libtpu: 0.0.40
codegen_flags: <defaults>
</compile_context>

<pallas_src>
import functools

import jax
import jax.numpy as jnp
from jax import lax
from jax.experimental import pallas as pl
from jax.experimental.pallas import tpu as pltpu


def _lstm_encoder_kernel(x2d_ref,      # (T*B, E)  bf16  all timesteps, time-major rows
                         wih_t_ref,    # (E, 4H)   bf16  W_ih^T  (gate cols: i,f,o,g)
                         whh_t_ref,    # (H, 4H)   f32   W_hh^T  (gate cols: i,f,o,g)
                         bias_ref,     # (1, 4H)   f32   b_ih + b_hh (reordered)
                         mask_ref,     # (B, H)    f32   pre-scaled dropout keep mask
                         out_ref,      # (B, H)    f32   dropped last hidden state
                         xw_sc,        # VMEM scratch (T*B, 4H) f32
                         *, seq_len, batch, hidden_size):
    T, B, H = seq_len, batch, hidden_size

    # ---- phase 0: hoisted input projection for ALL timesteps.
    # One throughput-bound MXU matmul: bf16 operands, f32 accumulate
    # (bf16 on the MXU is safe on v5e; gate math below stays f32).
    xw_sc[...] = (
        jnp.dot(x2d_ref[...], wih_t_ref[...],
                preferred_element_type=jnp.float32)
        + bias_ref[...]
    )

    whh_t = whh_t_ref[...]   # (H, 4H), VMEM/vreg resident for the whole recurrence
    # TODO(synk): pin whh_t in MXU weight regs via pltpu.matmul_push_rhs +
    # matmul_acc_lhs/matmul_pop to drop the per-step RHS push from the serial chain.

    # ---- recurrence: only h_prev @ W_hh^T sits on the serial dependence chain.
    def step(t, carry):
        h_prev, c_prev = carry
        gates = xw_sc[pl.ds(t * B, B), :] + jnp.dot(
            h_prev, whh_t, preferred_element_type=jnp.float32)   # (B, 4H)
        # Gate columns were permuted to [i, f, o, g] in the wrapper, so the
        # serial chain needs only 2 EUP issues: one wide sigmoid + one tanh.
        sig = jax.nn.sigmoid(gates[:, : 3 * H])     # i | f | o
        g_g = jnp.tanh(gates[:, 3 * H:])            # g
        i_g = sig[:, 0 * H:1 * H]
        f_g = sig[:, 1 * H:2 * H]
        o_g = sig[:, 2 * H:3 * H]
        c_new = f_g * c_prev + i_g * g_g
        h_new = o_g * jnp.tanh(c_new)
        return h_new, c_new

    h0 = jnp.zeros((B, H), jnp.float32)
    c0 = jnp.zeros((B, H), jnp.float32)
    # Full unroll is right at toy T=8; for production T use unroll=4..8 so the
    # carried h/c + per-step gate temporaries stay within the vreg budget.
    h_last, _ = lax.fori_loop(0, T, step, (h0, c0), unroll=True)

    # ---- dropout on the last hidden state (mask pre-scaled by 1/(1-p);
    #      all-ones in eval mode / p == 0).
    out_ref[...] = (h_last * mask_ref[...]).astype(out_ref.dtype)


def encoder_forward(embeddings, w_ih, w_hh, b_ih, b_hh, *,
                    p_dropout, dropout_key=None, training=True):
    """embeddings: (T, B, E); w_ih: (4H, E); w_hh: (4H, H); biases: (4H,).

    Returns the dropped final hidden state, shape (B, H) f32 — same as
    `Encoder.forward` (training-mode nn.Dropout semantics when training=True).
    """
    T, B, E = embeddings.shape
    H = w_hh.shape[1]

    # Reorder gate rows from PyTorch's [i, f, g, o] to [i, f, o, g] so the kernel
    # can fuse the three sigmoid gates into one EUP call.
    perm = jnp.concatenate([
        jnp.arange(0 * H, 1 * H),   # i
        jnp.arange(1 * H, 2 * H),   # f
        jnp.arange(3 * H, 4 * H),   # o
        jnp.arange(2 * H, 3 * H),   # g
    ])
    w_ih_r = jnp.asarray(w_ih)[perm]                 # (4H, E)
    w_hh_r = jnp.asarray(w_hh)[perm]                 # (4H, H)
    bias_r = (jnp.asarray(b_ih) + jnp.asarray(b_hh))[perm]

    # bf16 operands only for the throughput-bound phase-0 MXU matmul.
    x2d = embeddings.reshape(T * B, E).astype(jnp.bfloat16)     # (T*B, E)
    wih_t = jnp.transpose(w_ih_r).astype(jnp.bfloat16)          # (E, 4H)
    # Recurrence weights / gate math stay f32 (serial chain + v5e constraint).
    whh_t = jnp.transpose(w_hh_r).astype(jnp.float32)           # (H, 4H)
    bias = bias_r.reshape(1, 4 * H).astype(jnp.float32)         # (1, 4H)

    p = float(p_dropout)
    if training and p > 0.0:
        if p >= 1.0:
            mask = jnp.zeros((B, H), jnp.float32)
        else:
            if dropout_key is None:
                raise ValueError("dropout_key is required when training and 0 < p < 1")
            keep = jax.random.bernoulli(dropout_key, 1.0 - p, (B, H))
            mask = keep.astype(jnp.float32) * jnp.float32(1.0 / (1.0 - p))
    else:
        mask = jnp.ones((B, H), jnp.float32)

    kernel = functools.partial(_lstm_encoder_kernel,
                               seq_len=T, batch=B, hidden_size=H)

    return pl.pallas_call(
        kernel,
        out_shape=jax.ShapeDtypeStruct((B, H), jnp.float32),
        grid=(1,),
        in_specs=[
            pl.BlockSpec((T * B, E), lambda i: (0, 0)),      # x2d (VMEM-resident)
            pl.BlockSpec((E, 4 * H), lambda i: (0, 0)),      # W_ih^T
            pl.BlockSpec((H, 4 * H), lambda i: (0, 0)),      # W_hh^T
            pl.BlockSpec((1, 4 * H), lambda i: (0, 0)),      # bias
            pl.BlockSpec((B, H), lambda i: (0, 0)),          # dropout mask
        ],
        out_specs=pl.BlockSpec((B, H), lambda i: (0, 0)),
        scratch_shapes=[
            pltpu.VMEM((T * B, 4 * H), jnp.float32),         # hoisted XW
        ],
        compiler_params=pltpu.CompilerParams(
            dimension_semantics=("arbitrary",),
        ),
    )(x2d, wih_t, whh_t, bias, mask)


def init_encoder_params(key, emb_size, hidden_size):
    """Deterministic parameter init mirroring Encoder.__init__ / init_weights."""
    k_ih, k_hh, k_bih, k_bhh = jax.random.split(key, 4)
    H = hidden_size
    # init.uniform(weight_ih, a=-0.01, b=0.01)
    w_ih = jax.random.uniform(k_ih, (4 * H, emb_size), jnp.float32, -0.01, 0.01)
    # init.orthogonal(weight_hh): QR-based orthogonal init of (4H, H)
    a = jax.random.normal(k_hh, (4 * H, H), jnp.float32)
    q, r = jnp.linalg.qr(a)                      # q: (4H, H)
    q = q * jnp.sign(jnp.diagonal(r))[None, :]   # sign fix like torch orthogonal_
    w_hh = q
    # default PyTorch LSTM bias init: U(-1/sqrt(H), 1/sqrt(H))
    k = 1.0 / jnp.sqrt(jnp.float32(H))
    b_ih = jax.random.uniform(k_bih, (4 * H,), jnp.float32, -k, k)
    b_hh = jax.random.uniform(k_bhh, (4 * H,), jnp.float32, -k, k)
    return w_ih, w_hh, b_ih, b_hh


if __name__ == "__main__":
    # Small shapes: seq=8, batch=8, emb=32, hidden=32
    seq_len, batch, emb_size, hidden_size = 8, 8, 32, 32
    p_dropout = 0.3

    root = jax.random.PRNGKey(0)
    k_params, k_x, k_drop = jax.random.split(root, 3)

    w_ih, w_hh, b_ih, b_hh = init_encoder_params(k_params, emb_size, hidden_size)
    embeddings = jax.random.normal(k_x, (seq_len, batch, emb_size), jnp.float32)

    out = encoder_forward(embeddings, w_ih, w_hh, b_ih, b_hh,
                          p_dropout=p_dropout, dropout_key=k_drop, training=True)
    out = jax.block_until_ready(out)

    assert out.shape == (batch, hidden_size), out.shape
    assert out.dtype == jnp.float32
    assert bool(jnp.all(jnp.isfinite(out)))
    print("KERNEL_OK")
</pallas_src>

<mosaic_0001>
module attributes {stable_mosaic.version = 11 : i64} {
  func.func @_lstm_encoder_kernel(%arg0: i32, %arg1: memref<64x32xbf16, #tpu.memory_space<vmem>>, %arg2: memref<32x128xbf16, #tpu.memory_space<vmem>>, %arg3: memref<32x128xf32, #tpu.memory_space<vmem>>, %arg4: memref<1x128xf32, #tpu.memory_space<vmem>>, %arg5: memref<8x32xf32, #tpu.memory_space<vmem>>, %arg6: memref<8x32xf32, #tpu.memory_space<vmem>>, %arg7: memref<64x128xf32, #tpu.memory_space<vmem>>) attributes {dimension_semantics = [#tpu.dimension_semantics<arbitrary>], iteration_bounds = array<i64: 1>, scalar_prefetch = 0 : i64, scratch_operands = 1 : i64, tpu.core_type = #tpu.core_type<tc>, window_params = [{pipeline_mode = #tpu.pipeline_mode<synchronous>, transform_indices = @transform_0, window_bounds = array<i64: 64, 32>}, {pipeline_mode = #tpu.pipeline_mode<synchronous>, transform_indices = @transform_1, window_bounds = array<i64: 32, 128>}, {pipeline_mode = #tpu.pipeline_mode<synchronous>, transform_indices = @transform_2, window_bounds = array<i64: 32, 128>}, {pipeline_mode = #tpu.pipeline_mode<synchronous>, transform_indices = @transform_3, window_bounds = array<i64: 1, 128>}, {pipeline_mode = #tpu.pipeline_mode<synchronous>, transform_indices = @transform_4, window_bounds = array<i64: 8, 32>}, {pipeline_mode = #tpu.pipeline_mode<synchronous>, transform_indices = @transform_5, window_bounds = array<i64: 8, 32>}]} {
    %c0 = arith.constant 0 : index
    %c0_0 = arith.constant 0 : index
    %0 = vector.load %arg1[%c0, %c0_0] : memref<64x32xbf16, #tpu.memory_space<vmem>>, vector<64x32xbf16>
    %c0_1 = arith.constant 0 : index
    %c0_2 = arith.constant 0 : index
    %1 = vector.load %arg2[%c0_1, %c0_2] : memref<32x128xbf16, #tpu.memory_space<vmem>>, vector<32x128xbf16>
    %cst = arith.constant dense<0.000000e+00> : vector<64x128xf32>
    %2 = tpu.matmul %0, %1, %cst {dimension_numbers = #tpu.dot_dimension_numbers<[1], [0], [0], [1], [0, 0, 1, 1], [], []>} : vector<64x32xbf16>, vector<32x128xbf16>, vector<64x128xf32> -> vector<64x128xf32>
    %c0_3 = arith.constant 0 : index
    %c0_4 = arith.constant 0 : index
    %3 = vector.load %arg4[%c0_3, %c0_4] : memref<1x128xf32, #tpu.memory_space<vmem>>, vector<1x128xf32>
    %4 = vector.broadcast %3 : vector<1x128xf32> to vector<64x128xf32>
    %5 = arith.addf %2, %4 : vector<64x128xf32>
    %c0_5 = arith.constant 0 : index
    %c0_6 = arith.constant 0 : index
    %6 = vector.load %arg7[%c0_5, %c0_6] : memref<64x128xf32, #tpu.memory_space<vmem>>, vector<64x128xf32>
    tpu.vector_store %arg7[%c0_5, %c0_6], %5 {strides = array<i32>} : memref<64x128xf32, #tpu.memory_space<vmem>>, vector<64x128xf32>,
    %c0_7 = arith.constant 0 : index
    %c0_8 = arith.constant 0 : index
    %7 = vector.load %arg3[%c0_7, %c0_8] : memref<32x128xf32, #tpu.memory_space<vmem>>, vector<32x128xf32>
    %cst_9 = arith.constant 0.000000e+00 : f32
    %8 = vector.broadcast %cst_9 : f32 to vector<8x32xf32>
    %cst_10 = arith.constant 0.000000e+00 : f32
    %9 = vector.broadcast %cst_10 : f32 to vector<8x32xf32>
    %c0_i32 = arith.constant 0 : i32
    %c8_i32 = arith.constant 8 : i32
    %10 = arith.muli %c0_i32, %c8_i32 : i32
    %11 = arith.index_cast %10 : i32 to index
    %c0_11 = arith.constant 0 : index
    %12 = vector.load %arg7[%11, %c0_11] : memref<64x128xf32, #tpu.memory_space<vmem>>, vector<8x128xf32>
    %cst_12 = arith.constant dense<0.000000e+00> : vector<8x128xf32>
    %13 = tpu.matmul %8, %7, %cst_12 {dimension_numbers = #tpu.dot_dimension_numbers<[1], [0], [0], [1], [0, 0, 1, 1], [], []>} : vector<8x32xf32>, vector<32x128xf32>, vector<8x128xf32> -> vector<8x128xf32>
    %14 = arith.addf %12, %13 : vector<8x128xf32>
    %15 = vector.extract_strided_slice %14 {offsets = [0, 0], sizes = [8, 96], strides = [1, 1]} : vector<8x128xf32> to vector<8x96xf32>
    %16 = arith.negf %15 : vector<8x96xf32>
    %17 = math.exp %16 : vector<8x96xf32>
    %cst_13 = arith.constant 1.000000e+00 : f32
    %18 = vector.broadcast %cst_13 : f32 to vector<8x96xf32>
    %19 = arith.addf %18, %17 : vector<8x96xf32>
    %20 = arith.divf %18, %19 : vector<8x96xf32>
    %21 = vector.extract_strided_slice %14 {offsets = [0, 96], sizes = [8, 32], strides = [1, 1]} : vector<8x128xf32> to vector<8x32xf32>
    %22 = math.tanh %21 : vector<8x32xf32>
    %23 = vector.extract_strided_slice %20 {offsets = [0, 0], sizes = [8, 32], strides = [1, 1]} : vector<8x96xf32> to vector<8x32xf32>
    %24 = vector.extract_strided_slice %20 {offsets = [0, 32], sizes = [8, 32], strides = [1, 1]} : vector<8x96xf32> to vector<8x32xf32>
    %25 = vector.extract_strided_slice %20 {offsets = [0, 64], sizes = [8, 32], strides = [1, 1]} : vector<8x96xf32> to vector<8x32xf32>
    %26 = arith.mulf %24, %9 : vector<8x32xf32>
    %27 = arith.mulf %23, %22 : vector<8x32xf32>
    %28 = arith.addf %26, %27 : vector<8x32xf32>
    %29 = math.tanh %28 : vector<8x32xf32>
    %30 = arith.mulf %25, %29 : vector<8x32xf32>
    %c1_i32 = arith.constant 1 : i32
    %c8_i32_14 = arith.constant 8 : i32
    %31 = arith.muli %c1_i32, %c8_i32_14 : i32
    %32 = arith.index_cast %31 : i32 to index
    %c0_15 = arith.constant 0 : index
    %33 = vector.load %arg7[%32, %c0_15] : memref<64x128xf32, #tpu.memory_space<vmem>>, vector<8x128xf32>
    %cst_16 = arith.constant dense<0.000000e+00> : vector<8x128xf32>
    %34 = tpu.matmul %30, %7, %cst_16 {dimension_numbers = #tpu.dot_dimension_numbers<[1], [0], [0], [1], [0, 0, 1, 1], [], []>} : vector<8x32xf32>, vector<32x128xf32>, vector<8x128xf32> -> vector<8x128xf32>
    %35 = arith.addf %33, %34 : vector<8x128xf32>
    %36 = vector.extract_strided_slice %35 {offsets = [0, 0], sizes = [8, 96], strides = [1, 1]} : vector<8x128xf32> to vector<8x96xf32>
    %37 = arith.negf %36 : vector<8x96xf32>
    %38 = math.exp %37 : vector<8x96xf32>
    %cst_17 = arith.constant 1.000000e+00 : f32
    %39 = vector.broadcast %cst_17 : f32 to vector<8x96xf32>
    %40 = arith.addf %39, %38 : vector<8x96xf32>
    %41 = arith.divf %39, %40 : vector<8x96xf32>
    %42 = vector.extract_strided_slice %35 {offsets = [0, 96], sizes = [8, 32], strides = [1, 1]} : vector<8x128xf32> to vector<8x32xf32>
    %43 = math.tanh %42 : vector<8x32xf32>
    %44 = vector.extract_strided_slice %41 {offsets = [0, 0], sizes = [8, 32], strides = [1, 1]} : vector<8x96xf32> to vector<8x32xf32>
    %45 = vector.extract_strided_slice %41 {offsets = [0, 32], sizes = [8, 32], strides = [1, 1]} : vector<8x96xf32> to vector<8x32xf32>
    %46 = vector.extract_strided_slice %41 {offsets = [0, 64], sizes = [8, 32], strides = [1, 1]} : vector<8x96xf32> to vector<8x32xf32>
    %47 = arith.mulf %45, %28 : vector<8x32xf32>
    %48 = arith.mulf %44, %43 : vector<8x32xf32>
    %49 = arith.addf %47, %48 : vector<8x32xf32>
    %50 = math.tanh %49 : vector<8x32xf32>
    %51 = arith.mulf %46, %50 : vector<8x32xf32>
    %c2_i32 = arith.constant 2 : i32
    %c8_i32_18 = arith.constant 8 : i32
    %52 = arith.muli %c2_i32, %c8_i32_18 : i32
    %53 = arith.index_cast %52 : i32 to index
    %c0_19 = arith.constant 0 : index
    %54 = vector.load %arg7[%53, %c0_19] : memref<64x128xf32, #tpu.memory_space<vmem>>, vector<8x128xf32>
    %cst_20 = arith.constant dense<0.000000e+00> : vector<8x128xf32>
    %55 = tpu.matmul %51, %7, %cst_20 {dimension_numbers = #tpu.dot_dimension_numbers<[1], [0], [0], [1], [0, 0, 1, 1], [], []>} : vector<8x32xf32>, vector<32x128xf32>, vector<8x128xf32> -> vector<8x128xf32>
    %56 = arith.addf %54, %55 : vector<8x128xf32>
    %57 = vector.extract_strided_slice %56 {offsets = [0, 0], sizes = [8, 96], strides = [1, 1]} : vector<8x128xf32> to vector<8x96xf32>
    %58 = arith.negf %57 : vector<8x96xf32>
    %59 = math.exp %58 : vector<8x96xf32>
    %cst_21 = arith.constant 1.000000e+00 : f32
    %60 = vector.broadcast %cst_21 : f32 to vector<8x96xf32>
    %61 = arith.addf %60, %59 : vector<8x96xf32>
    %62 = arith.divf %60, %61 : vector<8x96xf32>
    %63 = vector.extract_strided_slice %56 {offsets = [0, 96], sizes = [8, 32], strides = [1, 1]} : vector<8x128xf32> to vector<8x32xf32>
    %64 = math.tanh %63 : vector<8x32xf32>
    %65 = vector.extract_strided_slice %62 {offsets = [0, 0], sizes = [8, 32], strides = [1, 1]} : vector<8x96xf32> to vector<8x32xf32>
    %66 = vector.extract_strided_slice %62 {offsets = [0, 32], sizes = [8, 32], strides = [1, 1]} : vector<8x96xf32> to vector<8x32xf32>
    %67 = vector.extract_strided_slice %62 {offsets = [0, 64], sizes = [8, 32], strides = [1, 1]} : vector<8x96xf32> to vector<8x32xf32>
    %68 = arith.mulf %66, %49 : vector<8x32xf32>
    %69 = arith.mulf %65, %64 : vector<8x32xf32>
    %70 = arith.addf %68, %69 : vector<8x32xf32>
    %71 = math.tanh %70 : vector<8x32xf32>
    %72 = arith.mulf %67, %71 : vector<8x32xf32>
    %c3_i32 = arith.constant 3 : i32
    %c8_i32_22 = arith.constant 8 : i32
    %73 = arith.muli %c3_i32, %c8_i32_22 : i32
    %74 = arith.index_cast %73 : i32 to index
    %c0_23 = arith.constant 0 : index
    %75 = vector.load %arg7[%74, %c0_23] : memref<64x128xf32, #tpu.memory_space<vmem>>, vector<8x128xf32>
    %cst_24 = arith.constant dense<0.000000e+00> : vector<8x128xf32>
    %76 = tpu.matmul %72, %7, %cst_24 {dimension_numbers = #tpu.dot_dimension_numbers<[1], [0], [0], [1], [0, 0, 1, 1], [], []>} : vector<8x32xf32>, vector<32x128xf32>, vector<8x128xf32> -> vector<8x128xf32>
    %77 = arith.addf %75, %76 : vector<8x128xf32>
    %78 = vector.extract_strided_slice %77 {offsets = [0, 0], sizes = [8, 96], strides = [1, 1]} : vector<8x128xf32> to vector<8x96xf32>
    %79 = arith.negf %78 : vector<8x96xf32>
    %80 = math.exp %79 : vector<8x96xf32>
    %cst_25 = arith.constant 1.000000e+00 : f32
    %81 = vector.broadcast %cst_25 : f32 to vector<8x96xf32>
    %82 = arith.addf %81, %80 : vector<8x96xf32>
    %83 = arith.divf %81, %82 : vector<8x96xf32>
    %84 = vector.extract_strided_slice %77 {offsets = [0, 96], sizes = [8, 32], strides = [1, 1]} : vector<8x128xf32> to vector<8x32xf32>
    %85 = math.tanh %84 : vector<8x32xf32>
    %86 = vector.extract_strided_slice %83 {offsets = [0, 0], sizes = [8, 32], strides = [1, 1]} : vector<8x96xf32> to vector<8x32xf32>
    %87 = vector.extract_strided_slice %83 {offsets = [0, 32], sizes = [8, 32], strides = [1, 1]} : vector<8x96xf32> to vector<8x32xf32>
    %88 = vector.extract_strided_slice %83 {offsets = [0, 64], sizes = [8, 32], strides = [1, 1]} : vector<8x96xf32> to vector<8x32xf32>
    %89 = arith.mulf %87, %70 : vector<8x32xf32>
    %90 = arith.mulf %86, %85 : vector<8x32xf32>
    %91 = arith.addf %89, %90 : vector<8x32xf32>
    %92 = math.tanh %91 : vector<8x32xf32>
    %93 = arith.mulf %88, %92 : vector<8x32xf32>
    %c4_i32 = arith.constant 4 : i32
    %c8_i32_26 = arith.constant 8 : i32
    %94 = arith.muli %c4_i32, %c8_i32_26 : i32
    %95 = arith.index_cast %94 : i32 to index
    %c0_27 = arith.constant 0 : index
    %96 = vector.load %arg7[%95, %c0_27] : memref<64x128xf32, #tpu.memory_space<vmem>>, vector<8x128xf32>
    %cst_28 = arith.constant dense<0.000000e+00> : vector<8x128xf32>
    %97 = tpu.matmul %93, %7, %cst_28 {dimension_numbers = #tpu.dot_dimension_numbers<[1], [0], [0], [1], [0, 0, 1, 1], [], []>} : vector<8x32xf32>, vector<32x128xf32>, vector<8x128xf32> -> vector<8x128xf32>
    %98 = arith.addf %96, %97 : vector<8x128xf32>
    %99 = vector.extract_strided_slice %98 {offsets = [0, 0], sizes = [8, 96], strides = [1, 1]} : vector<8x128xf32> to vector<8x96xf32>
    %100 = arith.negf %99 : vector<8x96xf32>
    %101 = math.exp %100 : vector<8x96xf32>
    %cst_29 = arith.constant 1.000000e+00 : f32
    %102 = vector.broadcast %cst_29 : f32 to vector<8x96xf32>
    %103 = arith.addf %102, %101 : vector<8x96xf32>
    %104 = arith.divf %102, %103 : vector<8x96xf32>
    %105 = vector.extract_strided_slice %98 {offsets = [0, 96], sizes = [8, 32], strides = [1, 1]} : vector<8x128xf32> to vector<8x32xf32>
    %106 = math.tanh %105 : vector<8x32xf32>
    %107 = vector.extract_strided_slice %104 {offsets = [0, 0], sizes = [8, 32], strides = [1, 1]} : vector<8x96xf32> to vector<8x32xf32>
    %108 = vector.extract_strided_slice %104 {offsets = [0, 32], sizes = [8, 32], strides = [1, 1]} : vector<8x96xf32> to vector<8x32xf32>
    %109 = vector.extract_strided_slice %104 {offsets = [0, 64], sizes = [8, 32], strides = [1, 1]} : vector<8x96xf32> to vector<8x32xf32>
    %110 = arith.mulf %108, %91 : vector<8x32xf32>
    %111 = arith.mulf %107, %106 : vector<8x32xf32>
    %112 = arith.addf %110, %111 : vector<8x32xf32>
    %113 = math.tanh %112 : vector<8x32xf32>
    %114 = arith.mulf %109, %113 : vector<8x32xf32>
    %c5_i32 = arith.constant 5 : i32
    %c8_i32_30 = arith.constant 8 : i32
    %115 = arith.muli %c5_i32, %c8_i32_30 : i32
    %116 = arith.index_cast %115 : i32 to index
    %c0_31 = arith.constant 0 : index
    %117 = vector.load %arg7[%116, %c0_31] : memref<64x128xf32, #tpu.memory_space<vmem>>, vector<8x128xf32>
    %cst_32 = arith.constant dense<0.000000e+00> : vector<8x128xf32>
    %118 = tpu.matmul %114, %7, %cst_32 {dimension_numbers = #tpu.dot_dimension_numbers<[1], [0], [0], [1], [0, 0, 1, 1], [], []>} : vector<8x32xf32>, vector<32x128xf32>, vector<8x128xf32> -> vector<8x128xf32>
    %119 = arith.addf %117, %118 : vector<8x128xf32>
    %120 = vector.extract_strided_slice %119 {offsets = [0, 0], sizes = [8, 96], strides = [1, 1]} : vector<8x128xf32> to vector<8x96xf32>
    %121 = arith.negf %120 : vector<8x96xf32>
    %122 = math.exp %121 : vector<8x96xf32>
    %cst_33 = arith.constant 1.000000e+00 : f32
    %123 = vector.broadcast %cst_33 : f32 to vector<8x96xf32>
    %124 = arith.addf %123, %122 : vector<8x96xf32>
    %125 = arith.divf %123, %124 : vector<8x96xf32>
    %126 = vector.extract_strided_slice %119 {offsets = [0, 96], sizes = [8, 32], strides = [1, 1]} : vector<8x128xf32> to vector<8x32xf32>
    %127 = math.tanh %126 : vector<8x32xf32>
    %128 = vector.extract_strided_slice %125 {offsets = [0, 0], sizes = [8, 32], strides = [1, 1]} : vector<8x96xf32> to vector<8x32xf32>
    %129 = vector.extract_strided_slice %125 {offsets = [0, 32], sizes = [8, 32], strides = [1, 1]} : vector<8x96xf32> to vector<8x32xf32>
    %130 = vector.extract_strided_slice %125 {offsets = [0, 64], sizes = [8, 32], strides = [1, 1]} : vector<8x96xf32> to vector<8x32xf32>
    %131 = arith.mulf %129, %112 : vector<8x32xf32>
    %132 = arith.mulf %128, %127 : vector<8x32xf32>
    %133 = arith.addf %131, %132 : vector<8x32xf32>
    %134 = math.tanh %133 : vector<8x32xf32>
    %135 = arith.mulf %130, %134 : vector<8x32xf32>
    %c6_i32 = arith.constant 6 : i32
    %c8_i32_34 = arith.constant 8 : i32
    %136 = arith.muli %c6_i32, %c8_i32_34 : i32
    %137 = arith.index_cast %136 : i32 to index
    %c0_35 = arith.constant 0 : index
    %138 = vector.load %arg7[%137, %c0_35] : memref<64x128xf32, #tpu.memory_space<vmem>>, vector<8x128xf32>
    %cst_36 = arith.constant dense<0.000000e+00> : vector<8x128xf32>
    %139 = tpu.matmul %135, %7, %cst_36 {dimension_numbers = #tpu.dot_dimension_numbers<[1], [0], [0], [1], [0, 0, 1, 1], [], []>} : vector<8x32xf32>, vector<32x128xf32>, vector<8x128xf32> -> vector<8x128xf32>
    %140 = arith.addf %138, %139 : vector<8x128xf32>
    %141 = vector.extract_strided_slice %140 {offsets = [0, 0], sizes = [8, 96], strides = [1, 1]} : vector<8x128xf32> to vector<8x96xf32>
    %142 = arith.negf %141 : vector<8x96xf32>
    %143 = math.exp %142 : vector<8x96xf32>
    %cst_37 = arith.constant 1.000000e+00 : f32
    %144 = vector.broadcast %cst_37 : f32 to vector<8x96xf32>
    %145 = arith.addf %144, %143 : vector<8x96xf32>
    %146 = arith.divf %144, %145 : vector<8x96xf32>
    %147 = vector.extract_strided_slice %140 {offsets = [0, 96], sizes = [8, 32], strides = [1, 1]} : vector<8x128xf32> to vector<8x32xf32>
    %148 = math.tanh %147 : vector<8x32xf32>
    %149 = vector.extract_strided_slice %146 {offsets = [0, 0], sizes = [8, 32], strides = [1, 1]} : vector<8x96xf32> to vector<8x32xf32>
    %150 = vector.extract_strided_slice %146 {offsets = [0, 32], sizes = [8, 32], strides = [1, 1]} : vector<8x96xf32> to vector<8x32xf32>
    %151 = vector.extract_strided_slice %146 {offsets = [0, 64], sizes = [8, 32], strides = [1, 1]} : vector<8x96xf32> to vector<8x32xf32>
    %152 = arith.mulf %150, %133 : vector<8x32xf32>
    %153 = arith.mulf %149, %148 : vector<8x32xf32>
    %154 = arith.addf %152, %153 : vector<8x32xf32>
    %155 = math.tanh %154 : vector<8x32xf32>
    %156 = arith.mulf %151, %155 : vector<8x32xf32>
    %c7_i32 = arith.constant 7 : i32
    %c8_i32_38 = arith.constant 8 : i32
    %157 = arith.muli %c7_i32, %c8_i32_38 : i32
    %158 = arith.index_cast %157 : i32 to index
    %c0_39 = arith.constant 0 : index
    %159 = vector.load %arg7[%158, %c0_39] : memref<64x128xf32, #tpu.memory_space<vmem>>, vector<8x128xf32>
    %cst_40 = arith.constant dense<0.000000e+00> : vector<8x128xf32>
    %160 = tpu.matmul %156, %7, %cst_40 {dimension_numbers = #tpu.dot_dimension_numbers<[1], [0], [0], [1], [0, 0, 1, 1], [], []>} : vector<8x32xf32>, vector<32x128xf32>, vector<8x128xf32> -> vector<8x128xf32>
    %161 = arith.addf %159, %160 : vector<8x128xf32>
    %162 = vector.extract_strided_slice %161 {offsets = [0, 0], sizes = [8, 96], strides = [1, 1]} : vector<8x128xf32> to vector<8x96xf32>
    %163 = arith.negf %162 : vector<8x96xf32>
    %164 = math.exp %163 : vector<8x96xf32>
    %cst_41 = arith.constant 1.000000e+00 : f32
    %165 = vector.broadcast %cst_41 : f32 to vector<8x96xf32>
    %166 = arith.addf %165, %164 : vector<8x96xf32>
    %167 = arith.divf %165, %166 : vector<8x96xf32>
    %168 = vector.extract_strided_slice %161 {offsets = [0, 96], sizes = [8, 32], strides = [1, 1]} : vector<8x128xf32> to vector<8x32xf32>
    %169 = math.tanh %168 : vector<8x32xf32>
    %170 = vector.extract_strided_slice %167 {offsets = [0, 0], sizes = [8, 32], strides = [1, 1]} : vector<8x96xf32> to vector<8x32xf32>
    %171 = vector.extract_strided_slice %167 {offsets = [0, 32], sizes = [8, 32], strides = [1, 1]} : vector<8x96xf32> to vector<8x32xf32>
    %172 = vector.extract_strided_slice %167 {offsets = [0, 64], sizes = [8, 32], strides = [1, 1]} : vector<8x96xf32> to vector<8x32xf32>
    %173 = arith.mulf %171, %154 : vector<8x32xf32>
    %174 = arith.mulf %170, %169 : vector<8x32xf32>
    %175 = arith.addf %173, %174 : vector<8x32xf32>
    %176 = math.tanh %175 : vector<8x32xf32>
    %177 = arith.mulf %172, %176 : vector<8x32xf32>
    %c8_i32_42 = arith.constant 8 : i32
    %c0_43 = arith.constant 0 : index
    %c0_44 = arith.constant 0 : index
    %178 = vector.load %arg5[%c0_43, %c0_44] : memref<8x32xf32, #tpu.memory_space<vmem>>, vector<8x32xf32>
    %179 = arith.mulf %177, %178 : vector<8x32xf32>
    %c0_45 = arith.constant 0 : index
    %c0_46 = arith.constant 0 : index
    %180 = vector.load %arg6[%c0_45, %c0_46] : memref<8x32xf32, #tpu.memory_space<vmem>>, vector<8x32xf32>
    tpu.vector_store %arg6[%c0_45, %c0_46], %179 {strides = array<i32>} : memref<8x32xf32, #tpu.memory_space<vmem>>, vector<8x32xf32>,
    return
  }
  func.func @transform_0(%arg0: i32) -> (i32, i32) {
    %c0_i32 = arith.constant 0 : i32
    %c0_i32_0 = arith.constant 0 : i32
    %c0_i32_1 = arith.constant 0 : i32
    return %c0_i32, %c0_i32_0 : i32, i32
  }
  func.func @transform_1(%arg0: i32) -> (i32, i32) {
    %c0_i32 = arith.constant 0 : i32
    %c0_i32_0 = arith.constant 0 : i32
    %c0_i32_1 = arith.constant 0 : i32
    return %c0_i32, %c0_i32_0 : i32, i32
  }
  func.func @transform_2(%arg0: i32) -> (i32, i32) {
    %c0_i32 = arith.constant 0 : i32
    %c0_i32_0 = arith.constant 0 : i32
    %c0_i32_1 = arith.constant 0 : i32
    return %c0_i32, %c0_i32_0 : i32, i32
  }
  func.func @transform_3(%arg0: i32) -> (i32, i32) {
    %c0_i32 = arith.constant 0 : i32
    %c0_i32_0 = arith.constant 0 : i32
    %c0_i32_1 = arith.constant 0 : i32
    return %c0_i32, %c0_i32_0 : i32, i32
  }
  func.func @transform_4(%arg0: i32) -> (i32, i32) {
    %c0_i32 = arith.constant 0 : i32
    %c0_i32_0 = arith.constant 0 : i32
    %c0_i32_1 = arith.constant 0 : i32
    return %c0_i32, %c0_i32_0 : i32, i32
  }
  func.func @transform_5(%arg0: i32) -> (i32, i32) {
    %c0_i32 = arith.constant 0 : i32
    %c0_i32_0 = arith.constant 0 : i32
    %c0_i32_1 = arith.constant 0 : i32
    return %c0_i32, %c0_i32_0 : i32, i32
  }
}

</mosaic_0001>

<llo_original>
// kernel: tpu_custom_call.1
$region0: #{tpu_custom_call.1}
  #allocation0 [shape = 'u32[]', space=smem, size = 0x4, offset = 0x4, fixed_abs, tag = 'smem constant byte address 0x4 - core index']
  #allocation1 [shape = 'u32[72,128]{1,0:T(1,128)}', space=vmem, size = 0x9000, scoped, tag = 'internal scratch']
  #allocation2 [shape = 'f32[64,128]{1,0:T(8,128)}', space=vmem, size = 0x8000, scoped, tag = 'scratch operand']
  %s0 = inlined_call_operand.vmem [shape: bf16[64,32], index: 0, kind: input, shape index: {}]
  %s1 = inlined_call_operand.vmem [shape: bf16[32,128], index: 1, kind: input, shape index: {}]
  %s2 = inlined_call_operand.vmem [shape: f32[32,128], index: 2, kind: input, shape index: {}]
  %s3 = inlined_call_operand.vmem [shape: f32[1,128], index: 3, kind: input, shape index: {}]
  %s4 = inlined_call_operand.hbm [shape: f32[8,32], index: 4, kind: input, shape index: {}]
  %s5 = inlined_call_operand.hbm [shape: f32[8,32], index: 5, kind: output, shape index: {}]
  %s6 = sld [smem:[#allocation0]]
  $region34: #{tpu_custom_call.1} parent=0
    _
  %s8 = ssub.s32 1, %s6
  %s9 = scalar_select 0, %s8, %s6
  $region1: #{tpu_custom_call.1} parent=0
    #allocation3 [shape = 'u8[4096]{0}', space=vmem, size = 0x1000, scoped, tag = 'input window, operand 4, single buffered']
    #allocation4 [shape = 's32[1]{0}', space=sflag, size = 0x4, scoped, tag = 'scoped memory for tpu_custom_call.1']
    #allocation5 [shape = 's32[1]{0}', space=sflag, size = 0x4, scoped, tag = 'scoped memory for tpu_custom_call.1']
    #allocation6 [shape = 'u8[4096]{0}', space=vmem, size = 0x1000, scoped, tag = 'output window, operand 0, single buffered']
    %10 = vsyncpa [#allocation4], 0
    %11 = vsyncpa [#allocation5], 0
    // Predicated region
    $region2: #{tpu_custom_call.1} parent=1 // pred_check
      _
    $region3: #{tpu_custom_call.1} parent=1 // pred_check_branch
      %13 = sbr.rel (0) target = $region5
    $region4: #{tpu_custom_call.1} parent=1 // pred_region
      _
    $region5: #{tpu_custom_call.1} parent=1 // pred_fallthru
      _
    // Predicated region
    $region6: #{tpu_custom_call.1} parent=1 // pred_check
      _
    $region7: #{tpu_custom_call.1} parent=1 // pred_check_branch
      %15 = sbr.rel (0) target = $region9
    $region8: #{tpu_custom_call.1} parent=1 // pred_region
      _
    $region9: #{tpu_custom_call.1} parent=1 // pred_fallthru
      _
    // Predicated region
    $region10: #{tpu_custom_call.1} parent=1 // pred_check
      _
    $region11: #{tpu_custom_call.1} parent=1 // pred_check_branch
      %17 = sbr.rel (0) target = $region13
    $region12: #{tpu_custom_call.1} parent=1 // pred_region
      _
    $region13: #{tpu_custom_call.1} parent=1 // pred_fallthru
      _
    // Predicated region
    $region14: #{tpu_custom_call.1} parent=1 // pred_check
      _
    $region15: #{tpu_custom_call.1} parent=1 // pred_check_branch
      %19 = sbr.rel (0) target = $region17
    $region16: #{tpu_custom_call.1} parent=1 // pred_region
      _
    $region17: #{tpu_custom_call.1} parent=1 // pred_fallthru
      _
    // Predicated region
    $region18: #{tpu_custom_call.1} parent=1 // pred_check
      _
    $region19: #{tpu_custom_call.1} parent=1 // pred_check_branch
      %21 = sbr.rel (0) target = $region21
    $region20: #{tpu_custom_call.1} parent=1 // pred_region
      %23 = vsyncadd [#allocation4], 0
      %s25 = sshll.u32 %s4, 4
      %s26 = int_to_ptr.hbm [resolvable:$true] %s25
      %s27 = sshll.u32 [#allocation3], 4
      %s28 = int_to_ptr.vmem [resolvable:$true] %s27
      %30 = dma.hbm_to_vmem [thread:$0]  %s26, 128, %s28, [#allocation4]
    $region21: #{tpu_custom_call.1} parent=1 // pred_fallthru
      _
    // Predicated region
    $region22: #{tpu_custom_call.1} parent=1 // pred_check
      _
    $region23: #{tpu_custom_call.1} parent=1 // pred_check_branch
      %32 = sbr.rel (0) target = $region25
    $region24: #{tpu_custom_call.1} parent=1 // pred_region
      %34 = dma.done [#allocation4], 128
    $region25: #{tpu_custom_call.1} parent=1 // pred_fallthru
      _
    %v36 = vld [vmem:[%s0] sm:$0xf]
    %v37 = vld [vmem:[%s0 + $0x4] sm:$0xf]
    %v38 = vld [vmem:[%s0 + $0x8] sm:$0xf]
    %v39 = vld [vmem:[%s0 + $0xc] sm:$0xf]
    %v40 = vld [vmem:[%s0 + $0x10] sm:$0xf]
    %v41 = vld [vmem:[%s0 + $0x14] sm:$0xf]
    %v42 = vld [vmem:[%s0 + $0x18] sm:$0xf]
    %v43 = vld [vmem:[%s0 + $0x1c] sm:$0xf]
    %v44 = vld [vmem:[%s1] sm:$0xf]
    %v45 = vld [vmem:[%s1 + $0x4] sm:$0xf]
    %v46 = vld [vmem:[%s1 + $0x8] sm:$0xf]
    %v47 = vld [vmem:[%s1 + $0xc] sm:$0xf]
    %v48 = vld [vmem:[%s3] sm:$0x1]
    %v50 = vperm.slane %v48, 0
    %v60 = vunpack.c.l.b16 %v36
    %v61 = vunpack.c.l.b16 %v37
    %v62 = vunpack.c.l.b16 %v38
    %v63 = vunpack.c.l.b16 %v39
    %v64 = vunpack.c.l.b16 %v40
    %v65 = vunpack.c.l.b16 %v41
    %v66 = vunpack.c.l.b16 %v42
    %v67 = vunpack.c.l.b16 %v43
    %v68 = vpack.c.b16 %v61, %v60
    %v69 = vpack.c.b16 %v63, %v62
    %v70 = vpack.c.b16 %v65, %v64
    %v71 = vpack.c.b16 %v67, %v66
    %v76 = vunpack.c.l.b16 %v44
    %v77 = vunpack.c.l.b16 %v45
    %v78 = vunpack.c.l.b16 %v46
    %v79 = vunpack.c.l.b16 %v47
    %v80 = vpack.c.b16 %v77, %v76
    %v81 = vpack.c.b16 %v79, %v78
    %vm84 = vcmask 261120
    %v86 = vsel %vm84, %v68, 0
    %v89 = vsel %vm84, %v69, 0
    %v92 = vsel %vm84, %v70, 0
    %v95 = vsel %vm84, %v71, 0
    %97 = vmatpush.bf16.msra.mxu0 0
    %98 = vmatpush.bf16.msra.mxu0 0
    %99 = vmatpush.bf16.msra.mxu0 0
    %100 = vmatpush.bf16.msra.mxu0 0
    %101 = vmatpush.bf16.msra.mxu0 0
    %102 = vmatpush.bf16.msra.mxu0 0
    %103 = vmatpush.bf16.msra.mxu0 %v81
    %104 = vmatpush.bf16.msra.mxu0 %v80
    %105 = vmatmul.bf16.gmra.mxu0 %v86
    %v106 = vpop.f32.mrf.mxu0
    %v107 = vadd.f32 %v50, %v106
    %v108 = vpop.f32.mrf.mxu0
    %v109 = vadd.f32 %v50, %v108
    %110 = vmatmul.bf16.gmra.mxu0 %v89
    %v111 = vpop.f32.mrf.mxu0
    %v112 = vadd.f32 %v50, %v111
    %v113 = vpop.f32.mrf.mxu0
    %v114 = vadd.f32 %v50, %v113
    %115 = vmatmul.bf16.gmra.mxu0 %v92
    %v116 = vpop.f32.mrf.mxu0
    %v117 = vadd.f32 %v50, %v116
    %v118 = vpop.f32.mrf.mxu0
    %v119 = vadd.f32 %v50, %v118
    %120 = vmatmul.bf16.gmra.mxu0 %v95
    %v121 = vpop.f32.mrf.mxu0
    %v122 = vadd.f32 %v50, %v121
    %v123 = vpop.f32.mrf.mxu0
    %v124 = vadd.f32 %v50, %v123
    %125 = vdwg.mxu0
    %126 = vst [vmem:[#allocation2] sm:$0xff] %v107
    %127 = vst [vmem:[#allocation2 + $0x8] sm:$0xff] %v109
    %128 = vst [vmem:[#allocation2 + $0x10] sm:$0xff] %v112
    %129 = vst [vmem:[#allocation2 + $0x18] sm:$0xff] %v114
    %130 = vst [vmem:[#allocation2 + $0x20] sm:$0xff] %v117
    %131 = vst [vmem:[#allocation2 + $0x28] sm:$0xff] %v119
    %132 = vst [vmem:[#allocation2 + $0x30] sm:$0xff] %v122
    %133 = vst [vmem:[#allocation2 + $0x38] sm:$0xff] %v124
    %v134 = vld [vmem:[%s2] sm:$0xff]
    %v135 = vld [vmem:[%s2 + $0x8] sm:$0xff]
    %v136 = vld [vmem:[%s2 + $0x10] sm:$0xff]
    %v137 = vld [vmem:[%s2 + $0x18] sm:$0xff]
    %v138 = vld [vmem:[#allocation2] sm:$0xff]
    %v140 = vsel %vm84, 0.0, 0
    %142 = vmatpush.msra.mxu0 0.0
    %143 = vmatpush.msra.mxu0 0.0
    %144 = vmatpush.msra.mxu0 0.0
    %145 = vmatpush.msra.mxu0 0.0
    %146 = vmatpush.msra.mxu0 0.0
    %147 = vmatpush.msra.mxu0 0.0
    %148 = vmatpush.msra.mxu0 0.0
    %149 = vmatpush.msra.mxu0 0.0
    %150 = vmatpush.msra.mxu0 0.0
    %151 = vmatpush.msra.mxu0 0.0
    %152 = vmatpush.msra.mxu0 0.0
    %153 = vmatpush.msra.mxu0 0.0
    %154 = vmatpush.msra.mxu0 %v137
    %155 = vmatpush.msra.mxu0 %v136
    %156 = vmatpush.msra.mxu0 %v135
    %157 = vmatpush.msra.mxu0 %v134
    %158 = vmatmul.f32.gmra.mxu0 %v140
    %v159 = vpop.f32.mrf.mxu0
    %v160 = vadd.f32 0.0, %v159
    %161 = vdwg.mxu0
    %v162 = vadd.f32 %v138, %v160
    %v163 = vxor.u32 %v162, 2147483648
    %v164 = vmul.f32 %v163, 1.442695
    %v165 = vpow.pop %v164
    %v166 = vadd.f32 %v165, 1.0
    %v167 = vrcp.pop %v166
    %v168 = vmul.f32 %v166, %v167
    %v169 = vsub.f32 1.0, %v168
    %v170 = vmul.f32 %v167, %v169
    %v171 = vadd.f32 %v167, %v170
    %vm172 = vweird.f32 %v166
    %vm173 = vweird.f32 %v167
    %vm174 = vmor %vm172, %vm173
    %v175 = vsel %vm174, %v167, %v171
    %v176 = vand.u32 2147483647, %v166
    %vm177 = vcmp.eq.f32.partialorder %v176, 8.507059e+37
    %v178 = vand.u32 %v166, 2147483648
    %v179 = vor.u32 1.1754944e-38, %v178
    %v180 = vsel %vm177, %v179, %v175
    %v181 = vmul.f32 1.0, %v180
    %v182 = vtanh.pop %v162
    %v183 = vmul.f32 %v181, 0.0
    %185 = vrot.lane.b32.xlu0 %v182, 32
    %v186 = vpop.permute.xlu0 %185
    %v188 = vmul.f32 %v181, %v186
    %190 = vrot.lane.b32.xlu0 %v188, 32
    %v191 = vpop.permute.xlu0 %190
    %v193 = vadd.f32 %v183, %v191
    %v194 = vtanh.pop %v193
    %196 = vrot.lane.b32.xlu0 %v194, 32
    %v197 = vpop.permute.xlu0 %196
    %v199 = vmul.f32 %v181, %v197
    %v200 = vld [vmem:[#allocation2 + $0x8] sm:$0xff]
    %202 = vrot.lane.b32.xlu0 %v199, 64
    %v203 = vpop.permute.xlu0 %202
    %v204 = vsel %vm84, %v203, 0
    %206 = vmatpush.msra.mxu0 0.0
    %207 = vmatpush.msra.mxu0 0.0
    %208 = vmatpush.msra.mxu0 0.0
    %209 = vmatpush.msra.mxu0 0.0
    %210 = vmatpush.msra.mxu0 0.0
    %211 = vmatpush.msra.mxu0 0.0
    %212 = vmatpush.msra.mxu0 0.0
    %213 = vmatpush.msra.mxu0 0.0
    %214 = vmatpush.msra.mxu0 0.0
    %215 = vmatpush.msra.mxu0 0.0
    %216 = vmatpush.msra.mxu0 0.0
    %217 = vmatpush.msra.mxu0 0.0
    %218 = vmatpush.msra.mxu0 %v137
    %219 = vmatpush.msra.mxu0 %v136
    %220 = vmatpush.msra.mxu0 %v135
    %221 = vmatpush.msra.mxu0 %v134
    %222 = vmatmul.f32.gmra.mxu0 %v204
    %v223 = vpop.f32.mrf.mxu0
    %v224 = vadd.f32 0.0, %v223
    %225 = vdwg.mxu0
    %v226 = vadd.f32 %v200, %v224
    %v227 = vxor.u32 %v226, 2147483648
    %v228 = vmul.f32 %v227, 1.442695
    %v229 = vpow.pop %v228
    %v230 = vadd.f32 %v229, 1.0
    %v231 = vrcp.pop %v230
    %v232 = vmul.f32 %v230, %v231
    %v233 = vsub.f32 1.0, %v232
    %v234 = vmul.f32 %v231, %v233
    %v235 = vadd.f32 %v231, %v234
    %vm236 = vweird.f32 %v230
    %vm237 = vweird.f32 %v231
    %vm238 = vmor %vm236, %vm237
    %v239 = vsel %vm238, %v231, %v235
    %v240 = vand.u32 2147483647, %v230
    %vm241 = vcmp.eq.f32.partialorder %v240, 8.507059e+37
    %v242 = vand.u32 %v230, 2147483648
    %v243 = vor.u32 1.1754944e-38, %v242
    %v244 = vsel %vm241, %v243, %v239
    %v245 = vmul.f32 1.0, %v244
    %v246 = vtanh.pop %v226
    %v247 = vmul.f32 %v245, %v193
    %249 = vrot.lane.b32.xlu0 %v246, 32
    %v250 = vpop.permute.xlu0 %249
    %v252 = vmul.f32 %v245, %v250
    %254 = vrot.lane.b32.xlu0 %v252, 32
    %v255 = vpop.permute.xlu0 %254
    %v257 = vadd.f32 %v247, %v255
    %v258 = vtanh.pop %v257
    %260 = vrot.lane.b32.xlu0 %v258, 32
    %v261 = vpop.permute.xlu0 %260
    %v263 = vmul.f32 %v245, %v261
    %v264 = vld [vmem:[#allocation2 + $0x10] sm:$0xff]
    %266 = vrot.lane.b32.xlu0 %v263, 64
    %v267 = vpop.permute.xlu0 %266
    %v268 = vsel %vm84, %v267, 0
    %270 = vmatpush.msra.mxu0 0.0
    %271 = vmatpush.msra.mxu0 0.0
    %272 = vmatpush.msra.mxu0 0.0
    %273 = vmatpush.msra.mxu0 0.0
    %274 = vmatpush.msra.mxu0 0.0
    %275 = vmatpush.msra.mxu0 0.0
    %276 = vmatpush.msra.mxu0 0.0
    %277 = vmatpush.msra.mxu0 0.0
    %278 = vmatpush.msra.mxu0 0.0
    %279 = vmatpush.msra.mxu0 0.0
    %280 = vmatpush.msra.mxu0 0.0
    %281 = vmatpush.msra.mxu0 0.0
    %282 = vmatpush.msra.mxu0 %v137
    %283 = vmatpush.msra.mxu0 %v136
    %284 = vmatpush.msra.mxu0 %v135
    %285 = vmatpush.msra.mxu0 %v134
    %286 = vmatmul.f32.gmra.mxu0 %v268
    %v287 = vpop.f32.mrf.mxu0
    %v288 = vadd.f32 0.0, %v287
    %289 = vdwg.mxu0
    %v290 = vadd.f32 %v264, %v288
    %v291 = vxor.u32 %v290, 2147483648
    %v292 = vmul.f32 %v291, 1.442695
    %v293 = vpow.pop %v292
    %v294 = vadd.f32 %v293, 1.0
    %v295 = vrcp.pop %v294
    %v296 = vmul.f32 %v294, %v295
    %v297 = vsub.f32 1.0, %v296
    %v298 = vmul.f32 %v295, %v297
    %v299 = vadd.f32 %v295, %v298
    %vm300 = vweird.f32 %v294
    %vm301 = vweird.f32 %v295
    %vm302 = vmor %vm300, %vm301
    %v303 = vsel %vm302, %v295, %v299
    %v304 = vand.u32 2147483647, %v294
    %vm305 = vcmp.eq.f32.partialorder %v304, 8.507059e+37
    %v306 = vand.u32 %v294, 2147483648
    %v307 = vor.u32 1.1754944e-38, %v306
    %v308 = vsel %vm305, %v307, %v303
    %v309 = vmul.f32 1.0, %v308
    %v310 = vtanh.pop %v290
    %v311 = vmul.f32 %v309, %v257
    %313 = vrot.lane.b32.xlu0 %v310, 32
    %v314 = vpop.permute.xlu0 %313
    %v316 = vmul.f32 %v309, %v314
    %318 = vrot.lane.b32.xlu0 %v316, 32
    %v319 = vpop.permute.xlu0 %318
    %v321 = vadd.f32 %v311, %v319
    %v322 = vtanh.pop %v321
    %324 = vrot.lane.b32.xlu0 %v322, 32
    %v325 = vpop.permute.xlu0 %324
    %v327 = vmul.f32 %v309, %v325
    %v328 = vld [vmem:[#allocation2 + $0x18] sm:$0xff]
    %330 = vrot.lane.b32.xlu0 %v327, 64
    %v331 = vpop.permute.xlu0 %330
    %v332 = vsel %vm84, %v331, 0
    %334 = vmatpush.msra.mxu0 0.0
    %335 = vmatpush.msra.mxu0 0.0
    %336 = vmatpush.msra.mxu0 0.0
    %337 = vmatpush.msra.mxu0 0.0
    %338 = vmatpush.msra.mxu0 0.0
    %339 = vmatpush.msra.mxu0 0.0
    %340 = vmatpush.msra.mxu0 0.0
    %341 = vmatpush.msra.mxu0 0.0
    %342 = vmatpush.msra.mxu0 0.0
    %343 = vmatpush.msra.mxu0 0.0
    %344 = vmatpush.msra.mxu0 0.0
    %345 = vmatpush.msra.mxu0 0.0
    %346 = vmatpush.msra.mxu0 %v137
    %347 = vmatpush.msra.mxu0 %v136
    %348 = vmatpush.msra.mxu0 %v135
    %349 = vmatpush.msra.mxu0 %v134
    %350 = vmatmul.f32.gmra.mxu0 %v332
    %v351 = vpop.f32.mrf.mxu0
    %v352 = vadd.f32 0.0, %v351
    %353 = vdwg.mxu0
    %v354 = vadd.f32 %v328, %v352
    %v355 = vxor.u32 %v354, 2147483648
    %v356 = vmul.f32 %v355, 1.442695
    %v357 = vpow.pop %v356
    %v358 = vadd.f32 %v357, 1.0
    %v359 = vrcp.pop %v358
    %v360 = vmul.f32 %v358, %v359
    %v361 = vsub.f32 1.0, %v360
    %v362 = vmul.f32 %v359, %v361
    %v363 = vadd.f32 %v359, %v362
    %vm364 = vweird.f32 %v358
    %vm365 = vweird.f32 %v359
    %vm366 = vmor %vm364, %vm365
    %v367 = vsel %vm366, %v359, %v363
    %v368 = vand.u32 2147483647, %v358
    %vm369 = vcmp.eq.f32.partialorder %v368, 8.507059e+37
    %v370 = vand.u32 %v358, 2147483648
    %v371 = vor.u32 1.1754944e-38, %v370
    %v372 = vsel %vm369, %v371, %v367
    %v373 = vmul.f32 1.0, %v372
    %v374 = vtanh.pop %v354
    %v375 = vmul.f32 %v373, %v321
    %377 = vrot.lane.b32.xlu0 %v374, 32
    %v378 = vpop.permute.xlu0 %377
    %v380 = vmul.f32 %v373, %v378
    %382 = vrot.lane.b32.xlu0 %v380, 32
    %v383 = vpop.permute.xlu0 %382
    %v385 = vadd.f32 %v375, %v383
    %v386 = vtanh.pop %v385
    %388 = vrot.lane.b32.xlu0 %v386, 32
    %v389 = vpop.permute.xlu0 %388
    %v391 = vmul.f32 %v373, %v389
    %v392 = vld [vmem:[#allocation2 + $0x20] sm:$0xff]
    %394 = vrot.lane.b32.xlu0 %v391, 64
    %v395 = vpop.permute.xlu0 %394
    %v396 = vsel %vm84, %v395, 0
    %398 = vmatpush.msra.mxu0 0.0
    %399 = vmatpush.msra.mxu0 0.0
    %400 = vmatpush.msra.mxu0 0.0
    %401 = vmatpush.msra.mxu0 0.0
    %402 = vmatpush.msra.mxu0 0.0
    %403 = vmatpush.msra.mxu0 0.0
    %404 = vmatpush.msra.mxu0 0.0
    %405 = vmatpush.msra.mxu0 0.0
    %406 = vmatpush.msra.mxu0 0.0
    %407 = vmatpush.msra.mxu0 0.0
    %408 = vmatpush.msra.mxu0 0.0
    %409 = vmatpush.msra.mxu0 0.0
    %410 = vmatpush.msra.mxu0 %v137
    %411 = vmatpush.msra.mxu0 %v136
    %412 = vmatpush.msra.mxu0 %v135
    %413 = vmatpush.msra.mxu0 %v134
    %414 = vmatmul.f32.gmra.mxu0 %v396
    %v415 = vpop.f32.mrf.mxu0
    %v416 = vadd.f32 0.0, %v415
    %417 = vdwg.mxu0
    %v418 = vadd.f32 %v392, %v416
    %v419 = vxor.u32 %v418, 2147483648
    %v420 = vmul.f32 %v419, 1.442695
    %v421 = vpow.pop %v420
    %v422 = vadd.f32 %v421, 1.0
    %v423 = vrcp.pop %v422
    %v424 = vmul.f32 %v422, %v423
    %v425 = vsub.f32 1.0, %v424
    %v426 = vmul.f32 %v423, %v425
    %v427 = vadd.f32 %v423, %v426
    %vm428 = vweird.f32 %v422
    %vm429 = vweird.f32 %v423
    %vm430 = vmor %vm428, %vm429
    %v431 = vsel %vm430, %v423, %v427
    %v432 = vand.u32 2147483647, %v422
    %vm433 = vcmp.eq.f32.partialorder %v432, 8.507059e+37
    %v434 = vand.u32 %v422, 2147483648
    %v435 = vor.u32 1.1754944e-38, %v434
    %v436 = vsel %vm433, %v435, %v431
    %v437 = vmul.f32 1.0, %v436
    %v438 = vtanh.pop %v418
    %v439 = vmul.f32 %v437, %v385
    %441 = vrot.lane.b32.xlu0 %v438, 32
    %v442 = vpop.permute.xlu0 %441
    %v444 = vmul.f32 %v437, %v442
    %446 = vrot.lane.b32.xlu0 %v444, 32
    %v447 = vpop.permute.xlu0 %446
    %v449 = vadd.f32 %v439, %v447
    %v450 = vtanh.pop %v449
    %452 = vrot.lane.b32.xlu0 %v450, 32
    %v453 = vpop.permute.xlu0 %452
    %v455 = vmul.f32 %v437, %v453
    %v456 = vld [vmem:[#allocation2 + $0x28] sm:$0xff]
    %458 = vrot.lane.b32.xlu0 %v455, 64
    %v459 = vpop.permute.xlu0 %458
    %v460 = vsel %vm84, %v459, 0
    %462 = vmatpush.msra.mxu0 0.0
    %463 = vmatpush.msra.mxu0 0.0
    %464 = vmatpush.msra.mxu0 0.0
    %465 = vmatpush.msra.mxu0 0.0
    %466 = vmatpush.msra.mxu0 0.0
    %467 = vmatpush.msra.mxu0 0.0
    %468 = vmatpush.msra.mxu0 0.0
    %469 = vmatpush.msra.mxu0 0.0
    %470 = vmatpush.msra.mxu0 0.0
    %471 = vmatpush.msra.mxu0 0.0
    %472 = vmatpush.msra.mxu0 0.0
    %473 = vmatpush.msra.mxu0 0.0
    %474 = vmatpush.msra.mxu0 %v137
    %475 = vmatpush.msra.mxu0 %v136
    %476 = vmatpush.msra.mxu0 %v135
    %477 = vmatpush.msra.mxu0 %v134
    %478 = vmatmul.f32.gmra.mxu0 %v460
    %v479 = vpop.f32.mrf.mxu0
    %v480 = vadd.f32 0.0, %v479
    %481 = vdwg.mxu0
    %v482 = vadd.f32 %v456, %v480
    %v483 = vxor.u32 %v482, 2147483648
    %v484 = vmul.f32 %v483, 1.442695
    %v485 = vpow.pop %v484
    %v486 = vadd.f32 %v485, 1.0
    %v487 = vrcp.pop %v486
    %v488 = vmul.f32 %v486, %v487
    %v489 = vsub.f32 1.0, %v488
    %v490 = vmul.f32 %v487, %v489
    %v491 = vadd.f32 %v487, %v490
    %vm492 = vweird.f32 %v486
    %vm493 = vweird.f32 %v487
    %vm494 = vmor %vm492, %vm493
    %v495 = vsel %vm494, %v487, %v491
    %v496 = vand.u32 2147483647, %v486
    %vm497 = vcmp.eq.f32.partialorder %v496, 8.507059e+37
    %v498 = vand.u32 %v486, 2147483648
    %v499 = vor.u32 1.1754944e-38, %v498
    %v500 = vsel %vm497, %v499, %v495
    %v501 = vmul.f32 1.0, %v500
    %v502 = vtanh.pop %v482
    %v503 = vmul.f32 %v501, %v449
    %505 = vrot.lane.b32.xlu0 %v502, 32
    %v506 = vpop.permute.xlu0 %505
    %v508 = vmul.f32 %v501, %v506
    %510 = vrot.lane.b32.xlu0 %v508, 32
    %v511 = vpop.permute.xlu0 %510
    %v513 = vadd.f32 %v503, %v511
    %v514 = vtanh.pop %v513
    %516 = vrot.lane.b32.xlu0 %v514, 32
    %v517 = vpop.permute.xlu0 %516
    %v519 = vmul.f32 %v501, %v517
    %v520 = vld [vmem:[#allocation2 + $0x30] sm:$0xff]
    %522 = vrot.lane.b32.xlu0 %v519, 64
    %v523 = vpop.permute.xlu0 %522
    %v524 = vsel %vm84, %v523, 0
    %526 = vmatpush.msra.mxu0 0.0
    %527 = vmatpush.msra.mxu0 0.0
    %528 = vmatpush.msra.mxu0 0.0
    %529 = vmatpush.msra.mxu0 0.0
    %530 = vmatpush.msra.mxu0 0.0
    %531 = vmatpush.msra.mxu0 0.0
    %532 = vmatpush.msra.mxu0 0.0
    %533 = vmatpush.msra.mxu0 0.0
    %534 = vmatpush.msra.mxu0 0.0
    %535 = vmatpush.msra.mxu0 0.0
    %536 = vmatpush.msra.mxu0 0.0
    %537 = vmatpush.msra.mxu0 0.0
    %538 = vmatpush.msra.mxu0 %v137
    %539 = vmatpush.msra.mxu0 %v136
    %540 = vmatpush.msra.mxu0 %v135
    %541 = vmatpush.msra.mxu0 %v134
    %542 = vmatmul.f32.gmra.mxu0 %v524
    %v543 = vpop.f32.mrf.mxu0
    %v544 = vadd.f32 0.0, %v543
    %545 = vdwg.mxu0
    %v546 = vadd.f32 %v520, %v544
    %v547 = vxor.u32 %v546, 2147483648
    %v548 = vmul.f32 %v547, 1.442695
    %v549 = vpow.pop %v548
    %v550 = vadd.f32 %v549, 1.0
    %v551 = vrcp.pop %v550
    %v552 = vmul.f32 %v550, %v551
    %v553 = vsub.f32 1.0, %v552
    %v554 = vmul.f32 %v551, %v553
    %v555 = vadd.f32 %v551, %v554
    %vm556 = vweird.f32 %v550
    %vm557 = vweird.f32 %v551
    %vm558 = vmor %vm556, %vm557
    %v559 = vsel %vm558, %v551, %v555
    %v560 = vand.u32 2147483647, %v550
    %vm561 = vcmp.eq.f32.partialorder %v560, 8.507059e+37
    %v562 = vand.u32 %v550, 2147483648
    %v563 = vor.u32 1.1754944e-38, %v562
    %v564 = vsel %vm561, %v563, %v559
    %v565 = vmul.f32 1.0, %v564
    %v566 = vtanh.pop %v546
    %v567 = vmul.f32 %v565, %v513
    %569 = vrot.lane.b32.xlu0 %v566, 32
    %v570 = vpop.permute.xlu0 %569
    %v572 = vmul.f32 %v565, %v570
    %574 = vrot.lane.b32.xlu0 %v572, 32
    %v575 = vpop.permute.xlu0 %574
    %v577 = vadd.f32 %v567, %v575
    %v578 = vtanh.pop %v577
    %580 = vrot.lane.b32.xlu0 %v578, 32
    %v581 = vpop.permute.xlu0 %580
    %v583 = vmul.f32 %v565, %v581
    %v584 = vld [vmem:[#allocation2 + $0x38] sm:$0xff]
    %586 = vrot.lane.b32.xlu0 %v583, 64
    %v587 = vpop.permute.xlu0 %586
    %v588 = vsel %vm84, %v587, 0
    %590 = vmatpush.msra.mxu0 0.0
    %591 = vmatpush.msra.mxu0 0.0
    %592 = vmatpush.msra.mxu0 0.0
    %593 = vmatpush.msra.mxu0 0.0
    %594 = vmatpush.msra.mxu0 0.0
    %595 = vmatpush.msra.mxu0 0.0
    %596 = vmatpush.msra.mxu0 0.0
    %597 = vmatpush.msra.mxu0 0.0
    %598 = vmatpush.msra.mxu0 0.0
    %599 = vmatpush.msra.mxu0 0.0
    %600 = vmatpush.msra.mxu0 0.0
    %601 = vmatpush.msra.mxu0 0.0
    %602 = vmatpush.msra.mxu0 %v137
    %603 = vmatpush.msra.mxu0 %v136
    %604 = vmatpush.msra.mxu0 %v135
    %605 = vmatpush.msra.mxu0 %v134
    %606 = vmatmul.f32.gmra.mxu0 %v588
    %v607 = vpop.f32.mrf.mxu0
    %v608 = vadd.f32 0.0, %v607
    %609 = vdwg.mxu0
    %v610 = vadd.f32 %v584, %v608
    %v611 = vxor.u32 %v610, 2147483648
    %v612 = vmul.f32 %v611, 1.442695
    %v613 = vpow.pop %v612
    %v614 = vadd.f32 %v613, 1.0
    %v615 = vrcp.pop %v614
    %v616 = vmul.f32 %v614, %v615
    %v617 = vsub.f32 1.0, %v616
    %v618 = vmul.f32 %v615, %v617
    %v619 = vadd.f32 %v615, %v618
    %vm620 = vweird.f32 %v614
    %vm621 = vweird.f32 %v615
    %vm622 = vmor %vm620, %vm621
    %v623 = vsel %vm622, %v615, %v619
    %v624 = vand.u32 2147483647, %v614
    %vm625 = vcmp.eq.f32.partialorder %v624, 8.507059e+37
    %v626 = vand.u32 %v614, 2147483648
    %v627 = vor.u32 1.1754944e-38, %v626
    %v628 = vsel %vm625, %v627, %v623
    %v629 = vmul.f32 1.0, %v628
    %v630 = vtanh.pop %v610
    %v631 = vmul.f32 %v629, %v577
    %633 = vrot.lane.b32.xlu0 %v630, 32
    %v634 = vpop.permute.xlu0 %633
    %v636 = vmul.f32 %v629, %v634
    %638 = vrot.lane.b32.xlu0 %v636, 32
    %v639 = vpop.permute.xlu0 %638
    %v641 = vadd.f32 %v631, %v639
    %v642 = vtanh.pop %v641
    %644 = vrot.lane.b32.xlu0 %v642, 32
    %v645 = vpop.permute.xlu0 %644
    %v647 = vmul.f32 %v629, %v645
    %v648 = vld [vmem:[#allocation3] sm:$0xff]
    %650 = vrot.lane.b32.xlu0 %v648, 64
    %v651 = vpop.permute.xlu0 %650
    %v653 = vmul.f32 %v647, %v651
    %655 = vrot.lane.b32.xlu0 %v653, 64
    %v656 = vpop.permute.xlu0 %655
    %658 = vst.msk [vmem:[#allocation6] sm:$0xff] %vm84, %v656
    // Predicated region
    $region26: #{tpu_custom_call.1} parent=1 // pred_check
      _
    $region27: #{tpu_custom_call.1} parent=1 // pred_check_branch
      %660 = sbr.rel (0) target = $region29
    $region28: #{tpu_custom_call.1} parent=1 // pred_region
      %662 = vsyncadd [#allocation5], 0
      %s664 = sshll.u32 [#allocation6], 4
      %s665 = int_to_ptr.vmem [resolvable:$true] %s664
      %s666 = sshll.u32 %s5, 4
      %s667 = int_to_ptr.hbm [resolvable:$true] %s666
      %669 = dma.vmem_to_hbm [thread:$0]  %s665, 128, %s667, [#allocation5]
    $region29: #{tpu_custom_call.1} parent=1 // pred_fallthru
      _
    // Predicated region
    $region30: #{tpu_custom_call.1} parent=1 // pred_check
      _
    $region31: #{tpu_custom_call.1} parent=1 // pred_check_branch
      %671 = sbr.rel (0) target = $region33
    $region32: #{tpu_custom_call.1} parent=1 // pred_region
      %673 = dma.done [#allocation5], 128
    $region33: #{tpu_custom_call.1} parent=1 // pred_fallthru
      _
    %674 = vsyncpa [#allocation4], 1
    %675 = vsyncpa [#allocation5], 1

</llo_original>
